<compile_context>
chip_gen: v7x
topology: tpu7x:2x2x1
jax: 0.10.0
libtpu: 0.0.40
codegen_flags: <defaults>
</compile_context>

<pallas_src>
import functools

import jax
import jax.numpy as jnp
from jax.experimental import pallas as pl
from jax.experimental.pallas import tpu as pltpu


def _round_up(n, m):
    return ((n + m - 1) // m) * m


def _num_tensorcores():
    """Best-effort TensorCore count of device 0 (dual-TC/megacore chips -> 2)."""
    try:
        kind = jax.devices()[0].device_kind.lower()
    except Exception:
        return 1
    return 2 if any(t in kind for t in ("v7", "v5p", "v4")) else 1


def _choose_tiling(batch, max_tb=8192):
    """Pick (TB, B_pad). Batch is the lane axis -> tiles are multiples of 128.

    Single-TC chips: one big step (the ~0.35us fixed per-step cost dominates
    this tiny kernel).  Dual-TC chips: an even number of steps so the
    "parallel" grid axis actually shards the batch across both cores.  VMEM is
    never the constraint here (<~5 MiB per step even at TB=8192).
    """
    n_tc = _num_tensorcores()
    b128 = _round_up(max(batch, 1), 128)
    n_steps = n_tc if b128 >= 128 * n_tc else 1
    tb = min(max_tb, _round_up(-(-b128 // n_steps), 128))
    b_pad = _round_up(b128, tb * n_steps)
    return tb, b_pad


def cem_mlp_kernel(xt_ref, w1t_ref, b1_ref, w2t_ref, b2_ref, out_ref):
    # Layer 1 (MXU): h^T = relu(W1 @ x^T + b1)   (H,S_pad)@(S_pad,TB) -> (H,TB)
    h = jnp.dot(w1t_ref[...], xt_ref[...], preferred_element_type=jnp.float32)
    h = jnp.maximum(h + b1_ref[...], 0.0)
    # Layer 2 (MXU): y^T = W2 @ h^T + b2         (A_pad,H)@(H,TB) -> (A_pad,TB)
    y = jnp.dot(w2t_ref[...], h, preferred_element_type=jnp.float32)
    out_ref[...] = (y + b2_ref[...]).astype(out_ref.dtype)


def cem_prepare_params(w1, b1, w2, b2):
    """One-time repack of params given in y = x@W + b layout:
       w1 (S,H), b1 (H,), w2 (H,A), b2 (A,)."""
    S, H = w1.shape
    A = w2.shape[1]
    S_pad = _round_up(S, 8)
    A_pad = _round_up(A, 8)
    w1t = jnp.zeros((H, S_pad), jnp.float32).at[:, :S].set(w1.T.astype(jnp.float32))
    b1c = b1.astype(jnp.float32).reshape(H, 1)
    w2t = jnp.zeros((A_pad, H), jnp.float32).at[:A, :].set(w2.T.astype(jnp.float32))
    b2c = jnp.zeros((A_pad, 1), jnp.float32).at[:A, 0].set(b2.astype(jnp.float32))
    return {"w1t": w1t, "b1c": b1c, "w2t": w2t, "b2c": b2c,
            "state_dim": S, "action_n": A}


@functools.partial(jax.jit,
                   static_argnames=("tb", "b_pad", "state_dim", "action_n"))
def _cem_forward_impl(x, w1t, b1c, w2t, b2c, *, tb, b_pad, state_dim, action_n):
    B = x.shape[0]
    H, S_pad = w1t.shape
    A_pad = w2t.shape[0]

    # Pack the (tiny) input transposed: batch -> lane axis, state dim padded to
    # 8 sublanes with zeros.  This and the final slice/transpose fuse under jit.
    xt = jnp.zeros((S_pad, b_pad), jnp.float32).at[:state_dim, :B].set(
        x.T.astype(jnp.float32))

    out_t = pl.pallas_call(
        cem_mlp_kernel,
        out_shape=jax.ShapeDtypeStruct((A_pad, b_pad), jnp.float32),
        grid=(b_pad // tb,),
        in_specs=[
            pl.BlockSpec((S_pad, tb), lambda i: (0, i)),   # x^T tile streams in
            pl.BlockSpec((H, S_pad), lambda i: (0, 0)),    # weights VMEM-resident
            pl.BlockSpec((H, 1), lambda i: (0, 0)),
            pl.BlockSpec((A_pad, H), lambda i: (0, 0)),
            pl.BlockSpec((A_pad, 1), lambda i: (0, 0)),
        ],
        out_specs=pl.BlockSpec((A_pad, tb), lambda i: (0, i)),
        compiler_params=pltpu.CompilerParams(
            dimension_semantics=("parallel",)),            # dual-TC shard on v7x
    )(xt, w1t, b1c, w2t, b2c)

    # Back to (B, action_n) logits (tiny: A_pad * B floats read).
    return out_t[:action_n, :B].T


def cem_forward(x, params):
    """x: (B, state_dim) f32; params from cem_prepare_params. Returns (B, action_n)."""
    tb, b_pad = _choose_tiling(x.shape[0])
    return _cem_forward_impl(
        x, params["w1t"], params["b1c"], params["w2t"], params["b2c"],
        tb=tb, b_pad=b_pad,
        state_dim=params["state_dim"], action_n=params["action_n"])


def cem_forward_ref(x, w1, b1, w2, b2):
    h = jnp.maximum(x @ w1 + b1, 0.0)
    return h @ w2 + b2


if __name__ == "__main__":
    # CartPole-like sizes: state_dim=4, hidden=128 (fixed by the module), action_n=2.
    batch, state_dim, hidden, action_n = 64, 4, 128, 2

    key = jax.random.PRNGKey(0)
    kx, k1, k2, k3, k4 = jax.random.split(key, 5)

    x = jax.random.normal(kx, (batch, state_dim), dtype=jnp.float32)
    # Deterministic parameter init (PyTorch-Linear-like uniform bounds).
    bound1 = 1.0 / (state_dim ** 0.5)
    bound2 = 1.0 / (hidden ** 0.5)
    w1 = jax.random.uniform(k1, (state_dim, hidden), jnp.float32, -bound1, bound1)
    b1 = jax.random.uniform(k2, (hidden,), jnp.float32, -bound1, bound1)
    w2 = jax.random.uniform(k3, (hidden, action_n), jnp.float32, -bound2, bound2)
    b2 = jax.random.uniform(k4, (action_n,), jnp.float32, -bound2, bound2)

    # One-time repack -- stays off the per-call hot path.
    params = cem_prepare_params(w1, b1, w2, b2)

    logits = cem_forward(x, params)
    logits = jax.block_until_ready(logits)

    expected = cem_forward_ref(x, w1, b1, w2, b2)
    assert logits.shape == (batch, action_n)
    assert jnp.allclose(logits, expected, atol=1e-3, rtol=1e-3)

    # TODO(synk): get_action's np.random.choice sampling, the gym env rollout in
    # get_trajectory/fit, and the Adam + CrossEntropyLoss update are host-side
    # control logic, not kernel hot paths; only the batched forward is a kernel.
    print("KERNEL_OK")
</pallas_src>

<mosaic_0001>
module attributes {stable_mosaic.version = 11 : i64} {
  func.func @cem_mlp_kernel(%arg0: i32, %arg1: memref<8x128xf32, #tpu.memory_space<vmem>>, %arg2: memref<128x8xf32, #tpu.memory_space<vmem>>, %arg3: memref<128x1xf32, #tpu.memory_space<vmem>>, %arg4: memref<8x128xf32, #tpu.memory_space<vmem>>, %arg5: memref<8x1xf32, #tpu.memory_space<vmem>>, %arg6: memref<8x128xf32, #tpu.memory_space<vmem>>) attributes {dimension_semantics = [#tpu.dimension_semantics<parallel>], iteration_bounds = array<i64: 1>, scalar_prefetch = 0 : i64, scratch_operands = 0 : i64, tpu.core_type = #tpu.core_type<tc>, window_params = [{transform_indices = @transform_0, window_bounds = array<i64: 8, 128>}, {pipeline_mode = #tpu.pipeline_mode<synchronous>, transform_indices = @transform_1, window_bounds = array<i64: 128, 8>}, {pipeline_mode = #tpu.pipeline_mode<synchronous>, transform_indices = @transform_2, window_bounds = array<i64: 128, 1>}, {pipeline_mode = #tpu.pipeline_mode<synchronous>, transform_indices = @transform_3, window_bounds = array<i64: 8, 128>}, {pipeline_mode = #tpu.pipeline_mode<synchronous>, transform_indices = @transform_4, window_bounds = array<i64: 8, 1>}, {transform_indices = @transform_5, window_bounds = array<i64: 8, 128>}]} {
    %c0 = arith.constant 0 : index
    %c0_0 = arith.constant 0 : index
    %0 = vector.load %arg2[%c0, %c0_0] : memref<128x8xf32, #tpu.memory_space<vmem>>, vector<128x8xf32>
    %c0_1 = arith.constant 0 : index
    %c0_2 = arith.constant 0 : index
    %1 = vector.load %arg1[%c0_1, %c0_2] : memref<8x128xf32, #tpu.memory_space<vmem>>, vector<8x128xf32>
    %cst = arith.constant dense<0.000000e+00> : vector<128x128xf32>
    %2 = tpu.matmul %0, %1, %cst {dimension_numbers = #tpu.dot_dimension_numbers<[1], [0], [0], [1], [0, 0, 1, 1], [], []>} : vector<128x8xf32>, vector<8x128xf32>, vector<128x128xf32> -> vector<128x128xf32>
    %c0_3 = arith.constant 0 : index
    %c0_4 = arith.constant 0 : index
    %3 = vector.load %arg3[%c0_3, %c0_4] : memref<128x1xf32, #tpu.memory_space<vmem>>, vector<128x1xf32>
    %4 = vector.broadcast %3 : vector<128x1xf32> to vector<128x128xf32>
    %5 = arith.addf %2, %4 : vector<128x128xf32>
    %cst_5 = arith.constant 0.000000e+00 : f32
    %6 = vector.broadcast %cst_5 : f32 to vector<128x128xf32>
    %7 = arith.maximumf %5, %6 : vector<128x128xf32>
    %c0_6 = arith.constant 0 : index
    %c0_7 = arith.constant 0 : index
    %8 = vector.load %arg4[%c0_6, %c0_7] : memref<8x128xf32, #tpu.memory_space<vmem>>, vector<8x128xf32>
    %cst_8 = arith.constant dense<0.000000e+00> : vector<8x128xf32>
    %9 = tpu.matmul %8, %7, %cst_8 {dimension_numbers = #tpu.dot_dimension_numbers<[1], [0], [0], [1], [0, 0, 1, 1], [], []>} : vector<8x128xf32>, vector<128x128xf32>, vector<8x128xf32> -> vector<8x128xf32>
    %c0_9 = arith.constant 0 : index
    %c0_10 = arith.constant 0 : index
    %10 = vector.load %arg5[%c0_9, %c0_10] : memref<8x1xf32, #tpu.memory_space<vmem>>, vector<8x1xf32>
    %11 = vector.broadcast %10 : vector<8x1xf32> to vector<8x128xf32>
    %12 = arith.addf %9, %11 : vector<8x128xf32>
    %c0_11 = arith.constant 0 : index
    %c0_12 = arith.constant 0 : index
    %13 = vector.load %arg6[%c0_11, %c0_12] : memref<8x128xf32, #tpu.memory_space<vmem>>, vector<8x128xf32>
    tpu.vector_store %arg6[%c0_11, %c0_12], %12 {strides = array<i32>} : memref<8x128xf32, #tpu.memory_space<vmem>>, vector<8x128xf32>,
    return
  }
  func.func @transform_0(%arg0: i32) -> (i32, i32) {
    %c0_i32 = arith.constant 0 : i32
    %c0_i32_0 = arith.constant 0 : i32
    return %c0_i32, %arg0 : i32, i32
  }
  func.func @transform_1(%arg0: i32) -> (i32, i32) {
    %c0_i32 = arith.constant 0 : i32
    %c0_i32_0 = arith.constant 0 : i32
    %c0_i32_1 = arith.constant 0 : i32
    return %c0_i32, %c0_i32_0 : i32, i32
  }
  func.func @transform_2(%arg0: i32) -> (i32, i32) {
    %c0_i32 = arith.constant 0 : i32
    %c0_i32_0 = arith.constant 0 : i32
    %c0_i32_1 = arith.constant 0 : i32
    return %c0_i32, %c0_i32_0 : i32, i32
  }
  func.func @transform_3(%arg0: i32) -> (i32, i32) {
    %c0_i32 = arith.constant 0 : i32
    %c0_i32_0 = arith.constant 0 : i32
    %c0_i32_1 = arith.constant 0 : i32
    return %c0_i32, %c0_i32_0 : i32, i32
  }
  func.func @transform_4(%arg0: i32) -> (i32, i32) {
    %c0_i32 = arith.constant 0 : i32
    %c0_i32_0 = arith.constant 0 : i32
    %c0_i32_1 = arith.constant 0 : i32
    return %c0_i32, %c0_i32_0 : i32, i32
  }
  func.func @transform_5(%arg0: i32) -> (i32, i32) {
    %c0_i32 = arith.constant 0 : i32
    %c0_i32_0 = arith.constant 0 : i32
    return %c0_i32, %arg0 : i32, i32
  }
}

</mosaic_0001>

<llo_original>
// kernel: _cem_forward_impl.1
$region0: #{_cem_forward_impl.1}
  #allocation0 [shape = 'u32[]', space=smem, size = 0x4, offset = 0x4, fixed_abs, tag = 'smem constant byte address 0x4 - core index']
  #allocation1 [shape = 'u32[144,128]{1,0:T(1,128)}', space=vmem, size = 0x12000, scoped, tag = 'internal scratch']
  %s0 = inlined_call_operand.vmem [shape: f32[8,128], index: 0, kind: input, shape index: {}]
  %s1 = inlined_call_operand.vmem [shape: f32[128,8], index: 1, kind: input, shape index: {}]
  %s2 = inlined_call_operand.vmem [shape: f32[128,1], index: 2, kind: input, shape index: {}]
  %s3 = inlined_call_operand.vmem [shape: f32[8,128], index: 3, kind: input, shape index: {}]
  %s4 = inlined_call_operand.vmem [shape: f32[8,1], index: 4, kind: input, shape index: {}]
  %s5 = inlined_call_operand.vmem [shape: f32[8,128], index: 5, kind: output, shape index: {}]
  %s6 = sld [smem:[#allocation0]]
  $region30: #{_cem_forward_impl.1} parent=0
    _
  %s8 = ssub.s32 1, %s6
  %s9 = scalar_select 0, %s8, %s6
  // Predicated region
  $region2: #{_cem_forward_impl.1} parent=0 // pred_check
    _
  $region3: #{_cem_forward_impl.1} parent=0 // pred_check_branch
    %11 = sbr.rel (0) target = $region5
  $region4: #{_cem_forward_impl.1} parent=0 // pred_region
    _
  $region5: #{_cem_forward_impl.1} parent=0 // pred_fallthru
    _
  // Predicated region
  $region6: #{_cem_forward_impl.1} parent=0 // pred_check
    _
  $region7: #{_cem_forward_impl.1} parent=0 // pred_check_branch
    %13 = sbr.rel (0) target = $region9
  $region8: #{_cem_forward_impl.1} parent=0 // pred_region
    _
  $region9: #{_cem_forward_impl.1} parent=0 // pred_fallthru
    _
  // Predicated region
  $region10: #{_cem_forward_impl.1} parent=0 // pred_check
    _
  $region11: #{_cem_forward_impl.1} parent=0 // pred_check_branch
    %15 = sbr.rel (0) target = $region13
  $region12: #{_cem_forward_impl.1} parent=0 // pred_region
    _
  $region13: #{_cem_forward_impl.1} parent=0 // pred_fallthru
    _
  // Predicated region
  $region14: #{_cem_forward_impl.1} parent=0 // pred_check
    _
  $region15: #{_cem_forward_impl.1} parent=0 // pred_check_branch
    %17 = sbr.rel (0) target = $region17
  $region16: #{_cem_forward_impl.1} parent=0 // pred_region
    _
  $region17: #{_cem_forward_impl.1} parent=0 // pred_fallthru
    _
  // Predicated region
  $region18: #{_cem_forward_impl.1} parent=0 // pred_check
    _
  $region19: #{_cem_forward_impl.1} parent=0 // pred_check_branch
    %19 = sbr.rel (0) target = $region21
  $region20: #{_cem_forward_impl.1} parent=0 // pred_region
    _
  $region21: #{_cem_forward_impl.1} parent=0 // pred_fallthru
    _
  %v20 = vld [vmem:[%s1] sm:$0xff]
  %v21 = vld [vmem:[%s1 + $0x8] sm:$0xff]
  %v22 = vld [vmem:[%s1 + $0x10] sm:$0xff]
  %v23 = vld [vmem:[%s1 + $0x18] sm:$0xff]
  %v24 = vld [vmem:[%s1 + $0x20] sm:$0xff]
  %v25 = vld [vmem:[%s1 + $0x28] sm:$0xff]
  %v26 = vld [vmem:[%s1 + $0x30] sm:$0xff]
  %v27 = vld [vmem:[%s1 + $0x38] sm:$0xff]
  %v28 = vld [vmem:[%s1 + $0x40] sm:$0xff]
  %v29 = vld [vmem:[%s1 + $0x48] sm:$0xff]
  %v30 = vld [vmem:[%s1 + $0x50] sm:$0xff]
  %v31 = vld [vmem:[%s1 + $0x58] sm:$0xff]
  %v32 = vld [vmem:[%s1 + $0x60] sm:$0xff]
  %v33 = vld [vmem:[%s1 + $0x68] sm:$0xff]
  %v34 = vld [vmem:[%s1 + $0x70] sm:$0xff]
  %v35 = vld [vmem:[%s1 + $0x78] sm:$0xff]
  %v36 = vld [vmem:[%s0] sm:$0xff]
  %v37 = vld [vmem:[%s2] sm:$0xff]
  %v38 = vld [vmem:[%s2 + $0x8] sm:$0xff]
  %v39 = vld [vmem:[%s2 + $0x10] sm:$0xff]
  %v40 = vld [vmem:[%s2 + $0x18] sm:$0xff]
  %v41 = vld [vmem:[%s2 + $0x20] sm:$0xff]
  %v42 = vld [vmem:[%s2 + $0x28] sm:$0xff]
  %v43 = vld [vmem:[%s2 + $0x30] sm:$0xff]
  %v44 = vld [vmem:[%s2 + $0x38] sm:$0xff]
  %v45 = vld [vmem:[%s2 + $0x40] sm:$0xff]
  %v46 = vld [vmem:[%s2 + $0x48] sm:$0xff]
  %v47 = vld [vmem:[%s2 + $0x50] sm:$0xff]
  %v48 = vld [vmem:[%s2 + $0x58] sm:$0xff]
  %v49 = vld [vmem:[%s2 + $0x60] sm:$0xff]
  %v50 = vld [vmem:[%s2 + $0x68] sm:$0xff]
  %v51 = vld [vmem:[%s2 + $0x70] sm:$0xff]
  %v52 = vld [vmem:[%s2 + $0x78] sm:$0xff]
  %54 = vset.pattern.permute.xlu0 0
  %55 = vperm.xlu0 %54, %v37
  %v56 = vpop.permute.xlu0 %55
  %59 = vset.pattern.permute.xlu0 0
  %60 = vperm.xlu0 %59, %v38
  %v61 = vpop.permute.xlu0 %60
  %64 = vset.pattern.permute.xlu0 0
  %65 = vperm.xlu0 %64, %v39
  %v66 = vpop.permute.xlu0 %65
  %69 = vset.pattern.permute.xlu0 0
  %70 = vperm.xlu0 %69, %v40
  %v71 = vpop.permute.xlu0 %70
  %74 = vset.pattern.permute.xlu0 0
  %75 = vperm.xlu0 %74, %v41
  %v76 = vpop.permute.xlu0 %75
  %79 = vset.pattern.permute.xlu0 0
  %80 = vperm.xlu0 %79, %v42
  %v81 = vpop.permute.xlu0 %80
  %84 = vset.pattern.permute.xlu0 0
  %85 = vperm.xlu0 %84, %v43
  %v86 = vpop.permute.xlu0 %85
  %89 = vset.pattern.permute.xlu0 0
  %90 = vperm.xlu0 %89, %v44
  %v91 = vpop.permute.xlu0 %90
  %94 = vset.pattern.permute.xlu0 0
  %95 = vperm.xlu0 %94, %v45
  %v96 = vpop.permute.xlu0 %95
  %99 = vset.pattern.permute.xlu0 0
  %100 = vperm.xlu0 %99, %v46
  %v101 = vpop.permute.xlu0 %100
  %104 = vset.pattern.permute.xlu0 0
  %105 = vperm.xlu0 %104, %v47
  %v106 = vpop.permute.xlu0 %105
  %109 = vset.pattern.permute.xlu0 0
  %110 = vperm.xlu0 %109, %v48
  %v111 = vpop.permute.xlu0 %110
  %114 = vset.pattern.permute.xlu0 0
  %115 = vperm.xlu0 %114, %v49
  %v116 = vpop.permute.xlu0 %115
  %119 = vset.pattern.permute.xlu0 0
  %120 = vperm.xlu0 %119, %v50
  %v121 = vpop.permute.xlu0 %120
  %124 = vset.pattern.permute.xlu0 0
  %125 = vperm.xlu0 %124, %v51
  %v126 = vpop.permute.xlu0 %125
  %129 = vset.pattern.permute.xlu0 0
  %130 = vperm.xlu0 %129, %v52
  %v131 = vpop.permute.xlu0 %130
  %vm133 = vcmask 64512
  %v135 = vsel %vm133, %v20, 0
  %v138 = vsel %vm133, %v21, 0
  %v141 = vsel %vm133, %v22, 0
  %v144 = vsel %vm133, %v23, 0
  %v147 = vsel %vm133, %v24, 0
  %v150 = vsel %vm133, %v25, 0
  %v153 = vsel %vm133, %v26, 0
  %v156 = vsel %vm133, %v27, 0
  %v159 = vsel %vm133, %v28, 0
  %v162 = vsel %vm133, %v29, 0
  %v165 = vsel %vm133, %v30, 0
  %v168 = vsel %vm133, %v31, 0
  %v171 = vsel %vm133, %v32, 0
  %v174 = vsel %vm133, %v33, 0
  %v177 = vsel %vm133, %v34, 0
  %v180 = vsel %vm133, %v35, 0
  %182 = vmatprep.subr.mxu0 0.0
  %183 = vmatpush1.msra.mxu0 %v36
  %184 = vmatprep.subr.mxu0 0.0
  %185 = vmatpush1.msra.mxu0 0.0
  %186 = vmatprep.subr.mxu0 0.0
  %187 = vmatpush1.msra.mxu0 0.0
  %188 = vmatprep.subr.mxu0 0.0
  %189 = vmatpush1.msra.mxu0 0.0
  %190 = vmatprep.subr.mxu0 0.0
  %191 = vmatpush1.msra.mxu0 0.0
  %192 = vmatprep.subr.mxu0 0.0
  %193 = vmatpush1.msra.mxu0 0.0
  %194 = vmatprep.subr.mxu0 0.0
  %195 = vmatpush1.msra.mxu0 0.0
  %196 = vmatprep.subr.mxu0 0.0
  %197 = vmatpush1.msra.mxu0 0.0
  %198 = vmatprep.subr.mxu0 0.0
  %199 = vmatpush1.msra.mxu0 0.0
  %200 = vmatprep.subr.mxu0 0.0
  %201 = vmatpush1.msra.mxu0 0.0
  %202 = vmatprep.subr.mxu0 0.0
  %203 = vmatpush1.msra.mxu0 0.0
  %204 = vmatprep.subr.mxu0 0.0
  %205 = vmatpush1.msra.mxu0 0.0
  %206 = vmatprep.subr.mxu0 0.0
  %207 = vmatpush1.msra.mxu0 0.0
  %208 = vmatprep.subr.mxu0 0.0
  %209 = vmatpush1.msra.mxu0 0.0
  %210 = vmatprep.subr.mxu0 0.0
  %211 = vmatpush1.msra.mxu0 0.0
  %212 = vmatprep.subr.mxu0 0.0
  %213 = vmatpush1.msra.mxu0 0.0
  %214 = vmatprep.subr.mxu0 0.0
  %215 = vmatpush1.msra.mxu0 0.0
  %216 = vmatprep.subr.mxu0 0.0
  %217 = vmatpush1.msra.mxu0 0.0
  %218 = vmatprep.subr.mxu0 0.0
  %219 = vmatpush1.msra.mxu0 0.0
  %220 = vmatprep.subr.mxu0 0.0
  %221 = vmatpush1.msra.mxu0 0.0
  %222 = vmatprep.subr.mxu0 0.0
  %223 = vmatpush1.msra.mxu0 0.0
  %224 = vmatprep.subr.mxu0 0.0
  %225 = vmatpush1.msra.mxu0 0.0
  %226 = vmatprep.subr.mxu0 0.0
  %227 = vmatpush1.msra.mxu0 0.0
  %228 = vmatprep.subr.mxu0 0.0
  %229 = vmatpush1.msra.mxu0 0.0
  %230 = vmatprep.subr.mxu0 0.0
  %231 = vmatpush1.msra.mxu0 0.0
  %232 = vmatprep.subr.mxu0 0.0
  %233 = vmatpush1.msra.mxu0 0.0
  %234 = vmatprep.subr.mxu0 0.0
  %235 = vmatpush1.msra.mxu0 0.0
  %236 = vmatprep.subr.mxu0 0.0
  %237 = vmatpush1.msra.mxu0 0.0
  %238 = vmatprep.subr.mxu0 0.0
  %239 = vmatpush1.msra.mxu0 0.0
  %240 = vmatprep.subr.mxu0 0.0
  %241 = vmatpush1.msra.mxu0 0.0
  %242 = vmatprep.subr.mxu0 0.0
  %243 = vmatpush1.msra.mxu0 0.0
  %244 = vmatprep.subr.mxu0 0.0
  %245 = vmatpush1.msra.mxu0 0.0
  %246 = vmatprep.mubr.f32.mxu0 0.0
  %247 = vmatmul.mubr.f32.gmra.mrb[0].mxu0 %v135
  %v248 = vpop.f32.mrb[0].mxu0
  %v249 = vadd.f32 %v56, %v248
  %v250 = vpop.f32.mrb[0].mxu0
  %251 = vmatprep.mubr.f32.mxu0 0.0
  %252 = vmatmul.mubr.f32.gmra.mrb[0].mxu0 %v138
  %v253 = vpop.f32.mrb[0].mxu0
  %v254 = vadd.f32 %v61, %v253
  %v255 = vpop.f32.mrb[0].mxu0
  %256 = vmatprep.mubr.f32.mxu0 0.0
  %257 = vmatmul.mubr.f32.gmra.mrb[0].mxu0 %v141
  %v258 = vpop.f32.mrb[0].mxu0
  %v259 = vadd.f32 %v66, %v258
  %v260 = vpop.f32.mrb[0].mxu0
  %261 = vmatprep.mubr.f32.mxu0 0.0
  %262 = vmatmul.mubr.f32.gmra.mrb[0].mxu0 %v144
  %v263 = vpop.f32.mrb[0].mxu0
  %v264 = vadd.f32 %v71, %v263
  %v265 = vpop.f32.mrb[0].mxu0
  %266 = vmatprep.mubr.f32.mxu0 0.0
  %267 = vmatmul.mubr.f32.gmra.mrb[0].mxu0 %v147
  %v268 = vpop.f32.mrb[0].mxu0
  %v269 = vadd.f32 %v76, %v268
  %v270 = vpop.f32.mrb[0].mxu0
  %271 = vmatprep.mubr.f32.mxu0 0.0
  %272 = vmatmul.mubr.f32.gmra.mrb[0].mxu0 %v150
  %v273 = vpop.f32.mrb[0].mxu0
  %v274 = vadd.f32 %v81, %v273
  %v275 = vpop.f32.mrb[0].mxu0
  %276 = vmatprep.mubr.f32.mxu0 0.0
  %277 = vmatmul.mubr.f32.gmra.mrb[0].mxu0 %v153
  %v278 = vpop.f32.mrb[0].mxu0
  %v279 = vadd.f32 %v86, %v278
  %v280 = vpop.f32.mrb[0].mxu0
  %281 = vmatprep.mubr.f32.mxu0 0.0
  %282 = vmatmul.mubr.f32.gmra.mrb[0].mxu0 %v156
  %v283 = vpop.f32.mrb[0].mxu0
  %v284 = vadd.f32 %v91, %v283
  %v285 = vpop.f32.mrb[0].mxu0
  %286 = vmatprep.mubr.f32.mxu0 0.0
  %287 = vmatmul.mubr.f32.gmra.mrb[0].mxu0 %v159
  %v288 = vpop.f32.mrb[0].mxu0
  %v289 = vadd.f32 %v96, %v288
  %v290 = vpop.f32.mrb[0].mxu0
  %291 = vmatprep.mubr.f32.mxu0 0.0
  %292 = vmatmul.mubr.f32.gmra.mrb[0].mxu0 %v162
  %v293 = vpop.f32.mrb[0].mxu0
  %v294 = vadd.f32 %v101, %v293
  %v295 = vpop.f32.mrb[0].mxu0
  %296 = vmatprep.mubr.f32.mxu0 0.0
  %297 = vmatmul.mubr.f32.gmra.mrb[0].mxu0 %v165
  %v298 = vpop.f32.mrb[0].mxu0
  %v299 = vadd.f32 %v106, %v298
  %v300 = vpop.f32.mrb[0].mxu0
  %301 = vmatprep.mubr.f32.mxu0 0.0
  %302 = vmatmul.mubr.f32.gmra.mrb[0].mxu0 %v168
  %v303 = vpop.f32.mrb[0].mxu0
  %v304 = vadd.f32 %v111, %v303
  %v305 = vpop.f32.mrb[0].mxu0
  %306 = vmatprep.mubr.f32.mxu0 0.0
  %307 = vmatmul.mubr.f32.gmra.mrb[0].mxu0 %v171
  %v308 = vpop.f32.mrb[0].mxu0
  %v309 = vadd.f32 %v116, %v308
  %v310 = vpop.f32.mrb[0].mxu0
  %311 = vmatprep.mubr.f32.mxu0 0.0
  %312 = vmatmul.mubr.f32.gmra.mrb[0].mxu0 %v174
  %v313 = vpop.f32.mrb[0].mxu0
  %v314 = vadd.f32 %v121, %v313
  %v315 = vpop.f32.mrb[0].mxu0
  %316 = vmatprep.mubr.f32.mxu0 0.0
  %317 = vmatmul.mubr.f32.gmra.mrb[0].mxu0 %v177
  %v318 = vpop.f32.mrb[0].mxu0
  %v319 = vadd.f32 %v126, %v318
  %v320 = vpop.f32.mrb[0].mxu0
  %321 = vmatprep.mubr.f32.mxu0 0.0
  %322 = vmatmul.mubr.f32.gmra.mrb[0].mxu0 %v180
  %v323 = vpop.f32.mrb[0].mxu0
  %v324 = vadd.f32 %v131, %v323
  %v325 = vpop.f32.mrb[0].mxu0
  %326 = vdwg.mxu0
  %v327 = vmax.f32 %v249, 0.0
  %v328 = vmax.f32 %v254, 0.0
  %v329 = vmax.f32 %v259, 0.0
  %v330 = vmax.f32 %v264, 0.0
  %v331 = vmax.f32 %v269, 0.0
  %v332 = vmax.f32 %v274, 0.0
  %v333 = vmax.f32 %v279, 0.0
  %v334 = vmax.f32 %v284, 0.0
  %v335 = vmax.f32 %v289, 0.0
  %v336 = vmax.f32 %v294, 0.0
  %v337 = vmax.f32 %v299, 0.0
  %v338 = vmax.f32 %v304, 0.0
  %v339 = vmax.f32 %v309, 0.0
  %v340 = vmax.f32 %v314, 0.0
  %v341 = vmax.f32 %v319, 0.0
  %v342 = vmax.f32 %v324, 0.0
  %v343 = vld [vmem:[%s3] sm:$0xff]
  %v344 = vld [vmem:[%s4] sm:$0xff]
  %346 = vset.pattern.permute.xlu0 0
  %347 = vperm.xlu0 %346, %v344
  %v348 = vpop.permute.xlu0 %347
  %350 = vmatprep.subr.mxu0 0.0
  %351 = vmatpush1.msra.mxu0 %v327
  %352 = vmatprep.subr.mxu0 0.0
  %353 = vmatpush1.msra.mxu0 %v328
  %354 = vmatprep.subr.mxu0 0.0
  %355 = vmatpush1.msra.mxu0 %v329
  %356 = vmatprep.subr.mxu0 0.0
  %357 = vmatpush1.msra.mxu0 %v330
  %358 = vmatprep.subr.mxu0 0.0
  %359 = vmatpush1.msra.mxu0 %v331
  %360 = vmatprep.subr.mxu0 0.0
  %361 = vmatpush1.msra.mxu0 %v332
  %362 = vmatprep.subr.mxu0 0.0
  %363 = vmatpush1.msra.mxu0 %v333
  %364 = vmatprep.subr.mxu0 0.0
  %365 = vmatpush1.msra.mxu0 %v334
  %366 = vmatprep.subr.mxu0 0.0
  %367 = vmatpush1.msra.mxu0 %v335
  %368 = vmatprep.subr.mxu0 0.0
  %369 = vmatpush1.msra.mxu0 %v336
  %370 = vmatprep.subr.mxu0 0.0
  %371 = vmatpush1.msra.mxu0 %v337
  %372 = vmatprep.subr.mxu0 0.0
  %373 = vmatpush1.msra.mxu0 %v338
  %374 = vmatprep.subr.mxu0 0.0
  %375 = vmatpush1.msra.mxu0 %v339
  %376 = vmatprep.subr.mxu0 0.0
  %377 = vmatpush1.msra.mxu0 %v340
  %378 = vmatprep.subr.mxu0 0.0
  %379 = vmatpush1.msra.mxu0 %v341
  %380 = vmatprep.subr.mxu0 0.0
  %381 = vmatpush1.msra.mxu0 %v342
  %382 = vmatprep.subr.mxu0 0.0
  %383 = vmatpush1.msra.mxu0 0.0
  %384 = vmatprep.subr.mxu0 0.0
  %385 = vmatpush1.msra.mxu0 0.0
  %386 = vmatprep.subr.mxu0 0.0
  %387 = vmatpush1.msra.mxu0 0.0
  %388 = vmatprep.subr.mxu0 0.0
  %389 = vmatpush1.msra.mxu0 0.0
  %390 = vmatprep.subr.mxu0 0.0
  %391 = vmatpush1.msra.mxu0 0.0
  %392 = vmatprep.subr.mxu0 0.0
  %393 = vmatpush1.msra.mxu0 0.0
  %394 = vmatprep.subr.mxu0 0.0
  %395 = vmatpush1.msra.mxu0 0.0
  %396 = vmatprep.subr.mxu0 0.0
  %397 = vmatpush1.msra.mxu0 0.0
  %398 = vmatprep.subr.mxu0 0.0
  %399 = vmatpush1.msra.mxu0 0.0
  %400 = vmatprep.subr.mxu0 0.0
  %401 = vmatpush1.msra.mxu0 0.0
  %402 = vmatprep.subr.mxu0 0.0
  %403 = vmatpush1.msra.mxu0 0.0
  %404 = vmatprep.subr.mxu0 0.0
  %405 = vmatpush1.msra.mxu0 0.0
  %406 = vmatprep.subr.mxu0 0.0
  %407 = vmatpush1.msra.mxu0 0.0
  %408 = vmatprep.subr.mxu0 0.0
  %409 = vmatpush1.msra.mxu0 0.0
  %410 = vmatprep.subr.mxu0 0.0
  %411 = vmatpush1.msra.mxu0 0.0
  %412 = vmatprep.subr.mxu0 0.0
  %413 = vmatpush1.msra.mxu0 0.0
  %414 = vmatprep.mubr.f32.mxu0 0.0
  %415 = vmatmul.mubr.f32.gmra.mrb[0].mxu0 %v343
  %v416 = vpop.f32.mrb[0].mxu0
  %v417 = vadd.f32 %v348, %v416
  %v418 = vpop.f32.mrb[0].mxu0
  %419 = vdwg.mxu0
  %420 = vst [vmem:[%s5] sm:$0xff] %v417
  // Predicated region
  $region22: #{_cem_forward_impl.1} parent=0 // pred_check
    _
  $region23: #{_cem_forward_impl.1} parent=0 // pred_check_branch
    %422 = sbr.rel (0) target = $region25
  $region24: #{_cem_forward_impl.1} parent=0 // pred_region
    _
  $region25: #{_cem_forward_impl.1} parent=0 // pred_fallthru
    _
  // Predicated region
  $region26: #{_cem_forward_impl.1} parent=0 // pred_check
    _
  $region27: #{_cem_forward_impl.1} parent=0 // pred_check_branch
    %424 = sbr.rel (0) target = $region29
  $region28: #{_cem_forward_impl.1} parent=0 // pred_region
    _
  $region29: #{_cem_forward_impl.1} parent=0 // pred_fallthru
    _

</llo_original>
